<compile_context>
chip_gen: v7x
topology: tpu7x:2x2x1
jax: 0.10.0
libtpu: 0.0.40
codegen_flags: <defaults>
</compile_context>

<pallas_src>
import functools

import jax
import jax.numpy as jnp
from jax.experimental import pallas as pl
from jax.experimental.pallas import tpu as pltpu


# ---------------------------------------------------------------------------
# Kernel
# ---------------------------------------------------------------------------
def _fused_two_conv_kernel(x_ref, w1_ref, b1_ref, w2_ref, b2_ref, o_ref):
    # x_ref : (B, H, WCp)      batch block; W*Cin zero-padded to WCp (lane tile)
    # w1_ref: (KH1*WCp, N1P)   tap-folded Toeplitz weights of conv1 (lane padded)
    # b1_ref: (1, N1P)
    # w2_ref: (KH2*N1P, N2P)   tap-folded Toeplitz weights of conv2 (lane padded)
    # b2_ref: (1, N2P)
    # o_ref : (B, Ho2, N2P)    lane-dense output (Wo2*C2 zero-padded to N2P)
    bb, h, wcp = x_ref.shape
    n1p = w1_ref.shape[1]
    kh1 = w1_ref.shape[0] // wcp
    kh2 = w2_ref.shape[0] // n1p
    ho1 = h - kh1 + 1
    ho2 = o_ref.shape[1]

    w1 = w1_ref[...]
    b1 = b1_ref[...]
    w2 = w2_ref[...]
    b2 = b2_ref[...]

    for b in range(bb):  # static unroll over the batch block
        # conv1: the KH1 row-shifted slabs are folded onto the contraction
        # (lane) axis -> a single (Ho1, KH1*WCp) @ (KH1*WCp, N1P) MXU matmul.
        # Each slab is exactly WCp=128k lanes, so the concat is tile-aligned.
        lhs1 = jnp.concatenate(
            [x_ref[b, k:k + ho1, :] for k in range(kh1)], axis=-1)
        hmid = jnp.dot(lhs1, w1, preferred_element_type=jnp.float32) + b1

        # conv2: same fold on the intermediate; it never leaves VMEM/vregs.
        lhs2 = jnp.concatenate(
            [hmid[k:k + ho2, :] for k in range(kh2)], axis=-1)
        y = jnp.dot(lhs2, w2, preferred_element_type=jnp.float32) + b2

        o_ref[b] = y.astype(o_ref.dtype)  # full-lane (N2P=128) store


# ---------------------------------------------------------------------------
# One-time parameter preparation (hoisted out of the per-forward hot path)
# ---------------------------------------------------------------------------
def _round_up(x, m):
    return ((x + m - 1) // m) * m


def _toeplitz_folded(w_hwio, in_width, k_row_pad, n_col_pad):
    """HWIO (KH,KW,Cin,Cout) -> (KH*k_row_pad, n_col_pad) tap-folded Toeplitz.

    Row layout: tap kh occupies rows [kh*k_row_pad, kh*k_row_pad + W*Cin) at
    index w*Cin + ci (remaining rows are zero).  Col layout: wo*Cout + co
    (remaining cols are zero).  With this weight, a valid conv over the width
    axis of an (H, W*Cin zero-padded to k_row_pad) activation becomes:
        concat_kh( act[kh : kh+Ho, :] ) @ weight
    i.e. a single matmul per KH-folded LHS.
    """
    kh, kw, cin, cout = w_hwio.shape
    wo = in_width - kw + 1
    w_idx = jnp.arange(in_width)[None, :, None]             # (1, W, 1)
    wo_idx = jnp.arange(wo)[None, None, :]                  # (1, 1, Wo)
    kw_idx = jnp.arange(kw)[:, None, None]                  # (KW, 1, 1)
    sel = (w_idx == wo_idx + kw_idx).astype(w_hwio.dtype)   # (KW, W, Wo)
    big = jnp.einsum('hkco,kwv->hwcvo', w_hwio, sel)        # (KH, W, Cin, Wo, Cout)
    big = big.reshape(kh, in_width * cin, wo * cout)
    big = jnp.pad(big, ((0, 0),
                        (0, k_row_pad - in_width * cin),
                        (0, n_col_pad - wo * cout)))
    return big.reshape(kh * k_row_pad, n_col_pad)


def prepare_params(params, in_h, in_w, lane=128):
    """Build the lane-padded, tap-folded Toeplitz weights/biases ONCE."""
    w1, b1, w2, b2 = params                   # HWIO weights, 1-D biases
    kh1, kw1, cin, c1 = w1.shape
    kh2, kw2, _, c2 = w2.shape
    wo1 = in_w - kw1 + 1
    wo2 = wo1 - kw2 + 1
    wcp = _round_up(in_w * cin, lane)          # 48  -> 128
    n1p = _round_up(wo1 * c1, lane)            # 140 -> 256
    n2p = _round_up(wo2 * c2, lane)            # 60  -> 128 (lane-dense output)

    arrays = dict(
        w1big=_toeplitz_folded(w1, in_w, wcp, n1p),    # (KH1*128, 256)
        b1big=jnp.pad(jnp.tile(b1, wo1), (0, n1p - wo1 * c1))[None, :],
        w2big=_toeplitz_folded(w2, wo1, n1p, n2p),     # (KH2*256, 128)
        b2big=jnp.pad(jnp.tile(b2, wo2), (0, n2p - wo2 * c2))[None, :],
    )
    static = dict(kh1=kh1, kh2=kh2, wo2=wo2, c2=c2, wcp=wcp)
    return arrays, static


# ---------------------------------------------------------------------------
# Forward wrapper
# ---------------------------------------------------------------------------
def first_nn_forward(x_nchw, arrays, *, static, block_b=8):
    """Pallas implementation of FirstNN.forward (two valid 3x3 convs, no act)."""
    w1big, b1big = arrays["w1big"], arrays["b1big"]
    w2big, b2big = arrays["w2big"], arrays["b2big"]
    kh1, kh2 = static["kh1"], static["kh2"]
    wo2, c2, wcp = static["wo2"], static["c2"], static["wcp"]
    n2p = w2big.shape[1]

    n, cin, h, w = x_nchw.shape
    ho1 = h - kh1 + 1
    ho2 = ho1 - kh2 + 1

    # Batch blocking: ceil(n/block_b) grid steps, but at least 2 when n >= 2 so
    # both v7x TensorCores get a block; each step amortizes the fixed grid cost.
    if n >= 2:
        n_blocks = max(2, -(-n // block_b))
    else:
        n_blocks = 1
    bb = -(-n // n_blocks)
    n_blocks = -(-n // bb)
    n_pad = n_blocks * bb

    # NCHW -> (N, H, W*Cin) with channels folded onto lanes, zero-padded to a
    # full lane tile so the in-kernel tap concat stays 128-aligned.
    xw = jnp.transpose(x_nchw, (0, 2, 3, 1)).reshape(n, h, w * cin)
    xw = jnp.pad(xw, ((0, n_pad - n), (0, 0), (0, wcp - w * cin)))

    y = pl.pallas_call(
        _fused_two_conv_kernel,
        out_shape=jax.ShapeDtypeStruct((n_pad, ho2, n2p), x_nchw.dtype),
        grid=(n_blocks,),                       # one batch block per grid step
        in_specs=[
            pl.BlockSpec((bb, h, wcp), lambda i: (i, 0, 0)),
            pl.BlockSpec(w1big.shape, lambda i: (0, 0)),   # constant -> DMA once
            pl.BlockSpec(b1big.shape, lambda i: (0, 0)),
            pl.BlockSpec(w2big.shape, lambda i: (0, 0)),
            pl.BlockSpec(b2big.shape, lambda i: (0, 0)),
        ],
        out_specs=pl.BlockSpec((bb, ho2, n2p), lambda i: (i, 0, 0)),
        compiler_params=pltpu.CompilerParams(
            dimension_semantics=("parallel",)),  # shard blocks across v7x cores
    )(xw, w1big, b1big, w2big, b2big)

    # Strip batch/lane padding, then (N, Ho2, Wo2*C2) -> NCHW (torch layout).
    y = y[:n, :, :wo2 * c2]
    return jnp.transpose(y.reshape(n, ho2, wo2, c2), (0, 3, 1, 2))


# ---------------------------------------------------------------------------
# Init / reference / test
# ---------------------------------------------------------------------------
def init_params(key):
    """Deterministic init matching the PyTorch layer shapes (uniform, fan-in scaled)."""
    k1, k2, k3, k4 = jax.random.split(key, 4)
    fan1 = 3 * 3 * 3
    fan2 = 10 * 3 * 3
    bnd1 = 1.0 / fan1 ** 0.5
    bnd2 = 1.0 / fan2 ** 0.5
    w1_oihw = jax.random.uniform(k1, (10, 3, 3, 3), jnp.float32, -bnd1, bnd1)
    b1 = jax.random.uniform(k2, (10,), jnp.float32, -bnd1, bnd1)
    w2_oihw = jax.random.uniform(k3, (5, 10, 3, 3), jnp.float32, -bnd2, bnd2)
    b2 = jax.random.uniform(k4, (5,), jnp.float32, -bnd2, bnd2)
    w1 = jnp.transpose(w1_oihw, (2, 3, 1, 0))    # OIHW -> HWIO
    w2 = jnp.transpose(w2_oihw, (2, 3, 1, 0))
    return w1, b1, w2, b2


def _reference(x_nchw, params):
    """Pure-JAX reference (lax conv) for correctness checking."""
    w1, b1, w2, b2 = params
    dn1 = jax.lax.conv_dimension_numbers(x_nchw.shape, w1.shape,
                                         ("NCHW", "HWIO", "NCHW"))
    h = jax.lax.conv_general_dilated(x_nchw, w1, (1, 1), "VALID",
                                     dimension_numbers=dn1)
    h = h + b1.reshape(1, -1, 1, 1)
    dn2 = jax.lax.conv_dimension_numbers(h.shape, w2.shape,
                                         ("NCHW", "HWIO", "NCHW"))
    y = jax.lax.conv_general_dilated(h, w2, (1, 1), "VALID",
                                     dimension_numbers=dn2)
    return y + b2.reshape(1, -1, 1, 1)


if __name__ == "__main__":
    key = jax.random.PRNGKey(0)
    kx, kp = jax.random.split(key)
    x = jax.random.normal(kx, (2, 3, 16, 16), jnp.float32)   # NCHW, like torch
    params = init_params(kp)

    # Toeplitz/bias expansion done exactly once (outside the hot path).
    arrays, static = prepare_params(params, in_h=16, in_w=16)

    fwd = jax.jit(functools.partial(first_nn_forward, static=static, block_b=8))
    y = jax.block_until_ready(fwd(x, arrays))
    assert y.shape == (2, 5, 12, 12), y.shape

    ref = _reference(x, params)
    assert jnp.allclose(y, ref, atol=1e-4, rtol=1e-4), "mismatch vs lax.conv reference"

    print("KERNEL_OK")
</pallas_src>

<mosaic_0001>
module attributes {stable_mosaic.version = 11 : i64} {
  func.func @_fused_two_conv_kernel(%arg0: i32, %arg1: memref<1x16x128xf32, #tpu.memory_space<vmem>>, %arg2: memref<384x256xf32, #tpu.memory_space<vmem>>, %arg3: memref<1x256xf32, #tpu.memory_space<vmem>>, %arg4: memref<768x128xf32, #tpu.memory_space<vmem>>, %arg5: memref<1x128xf32, #tpu.memory_space<vmem>>, %arg6: memref<1x12x128xf32, #tpu.memory_space<vmem>>) attributes {dimension_semantics = [#tpu.dimension_semantics<parallel>], iteration_bounds = array<i64: 2>, scalar_prefetch = 0 : i64, scratch_operands = 0 : i64, tpu.core_type = #tpu.core_type<tc>, window_params = [{transform_indices = @transform_0, window_bounds = array<i64: 1, 16, 128>}, {pipeline_mode = #tpu.pipeline_mode<synchronous>, transform_indices = @transform_1, window_bounds = array<i64: 384, 256>}, {pipeline_mode = #tpu.pipeline_mode<synchronous>, transform_indices = @transform_2, window_bounds = array<i64: 1, 256>}, {pipeline_mode = #tpu.pipeline_mode<synchronous>, transform_indices = @transform_3, window_bounds = array<i64: 768, 128>}, {pipeline_mode = #tpu.pipeline_mode<synchronous>, transform_indices = @transform_4, window_bounds = array<i64: 1, 128>}, {transform_indices = @transform_5, window_bounds = array<i64: 1, 12, 128>}]} {
    %c0 = arith.constant 0 : index
    %c0_0 = arith.constant 0 : index
    %0 = vector.load %arg2[%c0, %c0_0] : memref<384x256xf32, #tpu.memory_space<vmem>>, vector<384x256xf32>
    %c0_1 = arith.constant 0 : index
    %c0_2 = arith.constant 0 : index
    %1 = vector.load %arg3[%c0_1, %c0_2] : memref<1x256xf32, #tpu.memory_space<vmem>>, vector<1x256xf32>
    %c0_3 = arith.constant 0 : index
    %c0_4 = arith.constant 0 : index
    %2 = vector.load %arg4[%c0_3, %c0_4] : memref<768x128xf32, #tpu.memory_space<vmem>>, vector<768x128xf32>
    %c0_5 = arith.constant 0 : index
    %c0_6 = arith.constant 0 : index
    %3 = vector.load %arg5[%c0_5, %c0_6] : memref<1x128xf32, #tpu.memory_space<vmem>>, vector<1x128xf32>
    %c0_7 = arith.constant 0 : index
    %c0_8 = arith.constant 0 : index
    %c0_9 = arith.constant 0 : index
    %4 = vector.load %arg1[%c0_7, %c0_8, %c0_9] : memref<1x16x128xf32, #tpu.memory_space<vmem>>, vector<1x14x128xf32>
    %5 = vector.shape_cast %4 : vector<1x14x128xf32> to vector<14x128xf32>
    %c0_10 = arith.constant 0 : index
    %c1 = arith.constant 1 : index
    %c0_11 = arith.constant 0 : index
    %6 = vector.load %arg1[%c0_10, %c1, %c0_11] : memref<1x16x128xf32, #tpu.memory_space<vmem>>, vector<1x14x128xf32>
    %7 = vector.shape_cast %6 : vector<1x14x128xf32> to vector<14x128xf32>
    %c0_12 = arith.constant 0 : index
    %c2 = arith.constant 2 : index
    %c0_13 = arith.constant 0 : index
    %8 = vector.load %arg1[%c0_12, %c2, %c0_13] : memref<1x16x128xf32, #tpu.memory_space<vmem>>, vector<1x14x128xf32>
    %9 = vector.shape_cast %8 : vector<1x14x128xf32> to vector<14x128xf32>
    %10 = tpu.concatenate %5, %7, %9 in 1 : vector<14x128xf32>, vector<14x128xf32>, vector<14x128xf32> -> vector<14x384xf32>
    %cst = arith.constant dense<0.000000e+00> : vector<14x256xf32>
    %11 = tpu.matmul %10, %0, %cst {dimension_numbers = #tpu.dot_dimension_numbers<[1], [0], [0], [1], [0, 0, 1, 1], [], []>} : vector<14x384xf32>, vector<384x256xf32>, vector<14x256xf32> -> vector<14x256xf32>
    %12 = vector.broadcast %1 : vector<1x256xf32> to vector<14x256xf32>
    %13 = arith.addf %11, %12 : vector<14x256xf32>
    %14 = vector.extract_strided_slice %13 {offsets = [0, 0], sizes = [12, 256], strides = [1, 1]} : vector<14x256xf32> to vector<12x256xf32>
    %15 = vector.extract_strided_slice %13 {offsets = [1, 0], sizes = [12, 256], strides = [1, 1]} : vector<14x256xf32> to vector<12x256xf32>
    %16 = vector.extract_strided_slice %13 {offsets = [2, 0], sizes = [12, 256], strides = [1, 1]} : vector<14x256xf32> to vector<12x256xf32>
    %17 = tpu.concatenate %14, %15, %16 in 1 : vector<12x256xf32>, vector<12x256xf32>, vector<12x256xf32> -> vector<12x768xf32>
    %cst_14 = arith.constant dense<0.000000e+00> : vector<12x128xf32>
    %18 = tpu.matmul %17, %2, %cst_14 {dimension_numbers = #tpu.dot_dimension_numbers<[1], [0], [0], [1], [0, 0, 1, 1], [], []>} : vector<12x768xf32>, vector<768x128xf32>, vector<12x128xf32> -> vector<12x128xf32>
    %19 = vector.broadcast %3 : vector<1x128xf32> to vector<12x128xf32>
    %20 = arith.addf %18, %19 : vector<12x128xf32>
    %c0_15 = arith.constant 0 : index
    %c0_16 = arith.constant 0 : index
    %c0_17 = arith.constant 0 : index
    %21 = vector.load %arg6[%c0_15, %c0_16, %c0_17] : memref<1x12x128xf32, #tpu.memory_space<vmem>>, vector<1x12x128xf32>
    %22 = vector.shape_cast %21 : vector<1x12x128xf32> to vector<12x128xf32>
    %23 = vector.shape_cast %20 : vector<12x128xf32> to vector<1x12x128xf32>
    tpu.vector_store %arg6[%c0_15, %c0_16, %c0_17], %23 {strides = array<i32>} : memref<1x12x128xf32, #tpu.memory_space<vmem>>, vector<1x12x128xf32>,
    return
  }
  func.func @transform_0(%arg0: i32) -> (i32, i32, i32) {
    %c0_i32 = arith.constant 0 : i32
    %c0_i32_0 = arith.constant 0 : i32
    %c0_i32_1 = arith.constant 0 : i32
    return %arg0, %c0_i32, %c0_i32_0 : i32, i32, i32
  }
  func.func @transform_1(%arg0: i32) -> (i32, i32) {
    %c0_i32 = arith.constant 0 : i32
    %c0_i32_0 = arith.constant 0 : i32
    %c0_i32_1 = arith.constant 0 : i32
    return %c0_i32, %c0_i32_0 : i32, i32
  }
  func.func @transform_2(%arg0: i32) -> (i32, i32) {
    %c0_i32 = arith.constant 0 : i32
    %c0_i32_0 = arith.constant 0 : i32
    %c0_i32_1 = arith.constant 0 : i32
    return %c0_i32, %c0_i32_0 : i32, i32
  }
  func.func @transform_3(%arg0: i32) -> (i32, i32) {
    %c0_i32 = arith.constant 0 : i32
    %c0_i32_0 = arith.constant 0 : i32
    %c0_i32_1 = arith.constant 0 : i32
    return %c0_i32, %c0_i32_0 : i32, i32
  }
  func.func @transform_4(%arg0: i32) -> (i32, i32) {
    %c0_i32 = arith.constant 0 : i32
    %c0_i32_0 = arith.constant 0 : i32
    %c0_i32_1 = arith.constant 0 : i32
    return %c0_i32, %c0_i32_0 : i32, i32
  }
  func.func @transform_5(%arg0: i32) -> (i32, i32, i32) {
    %c0_i32 = arith.constant 0 : i32
    %c0_i32_0 = arith.constant 0 : i32
    %c0_i32_1 = arith.constant 0 : i32
    return %arg0, %c0_i32, %c0_i32_0 : i32, i32, i32
  }
}

</mosaic_0001>

<llo_original>
// kernel: first_nn_forward.1
$region0: #{first_nn_forward.1}
  #allocation0 [shape = 'u32[]', space=smem, size = 0x4, offset = 0x4, fixed_abs, tag = 'smem constant byte address 0x4 - core index']
  #allocation1 [shape = 'u32[144,128]{1,0:T(1,128)}', space=vmem, size = 0x12000, scoped, tag = 'internal scratch']
  %s0 = inlined_call_operand.vmem [shape: f32[2,16,128], index: 0, kind: input, shape index: {}]
  %s1 = inlined_call_operand.hbm [shape: f32[384,256], index: 1, kind: input, shape index: {}]
  %s2 = inlined_call_operand.vmem [shape: f32[1,256], index: 2, kind: input, shape index: {}]
  %s3 = inlined_call_operand.hbm [shape: f32[768,128], index: 3, kind: input, shape index: {}]
  %s4 = inlined_call_operand.vmem [shape: f32[1,128], index: 4, kind: input, shape index: {}]
  %s5 = inlined_call_operand.vmem [shape: f32[2,12,128], index: 5, kind: output, shape index: {}]
  %s6 = sld [smem:[#allocation0]]
  $region61: #{first_nn_forward.1} parent=0
    _
  %s8 = ssub.s32 1, %s6
  %s9 = scalar_select 0, %s8, %s6
  $region1: #{first_nn_forward.1} parent=0
    #allocation2 [shape = 'u8[393216]{0}', space=vmem, size = 0x60000, scoped, tag = 'input window, operand 1, single buffered']
    #allocation3 [shape = 's32[2]{0}', space=sflag, size = 0x8, scoped, tag = 'scoped memory for first_nn_forward.1']
    #allocation4 [shape = 'u8[393216]{0}', space=vmem, size = 0x60000, scoped, tag = 'input window, operand 3, single buffered']
    #allocation5 [shape = 's32[1]{0}', space=sflag, size = 0x4, scoped, tag = 'scoped memory for first_nn_forward.1']
    %10 = vsyncpa [#allocation3], 0
    %11 = vsyncpa [#allocation5], 0
    loop: start=0, step=1, limit=4
    $region2: #{first_nn_forward.1} parent=1 // loop_pre_header
      _
    $region3: #{first_nn_forward.1} parent=1 // loop_header
      %s13 = sphi 0, %s17
      %p14 = scmp.ge.s32.totalorder %s13, 4
      %s23 = sphi 0, %s25
      %s26 = sphi 0, %s23
      %s27 = sphi 0, %s26
      %s43 = sphi 0, %s27
      %s47 = sphi 0, %s47
      %s49 = sphi 0, %s47
      %s50 = sphi 0, %s49
      %s64 = sphi 0, %s50
      %s68 = sphi 0, %s68
      %s70 = sphi 0, %s68
      %s71 = sphi 0, %s70
      %s85 = sphi 0, %s71
      %s89 = sphi 0, %s89
      %s91 = sphi 0, %s89
      %s92 = sphi 0, %s91
      %s106 = sphi 0, %s92
      %s110 = sphi 0, %s110
      %s112 = sphi 0, %s110
      %s113 = sphi 0, %s112
      %s127 = sphi 0, %s113
      %s133 = sphi 0, %s135
      %s136 = sphi 0, %s133
      %s137 = sphi 0, %s136
      %s153 = sphi 0, %s137
    $region4: #{first_nn_forward.1} parent=1 // loop_header_branch
      %16 = sbr.rel (%p14) target = $region8
    $region5: #{first_nn_forward.1} parent=1 // loop_body
      %s18 = ssub.s32 %s13, 1
      %s19 = ssub.s32 %s13, 2
      %s20 = sadd.s32 %s13, 1
      %s21 = ssub.s32 %s13, %s20
      %p22 = scmp.eq.s32.totalorder %s21, 0
      %s24 = sadd.s32 %s23, 1
      %s25 = scalar_select %p22, %s23, %s24
      %p28 = pneg %p22
      %p29 = scmp.eq.s32.totalorder %s13, 1
      %p30 = por %p28, %p29
      %p31 = scmp.ne.s32.totalorder %s23, %s26
      %p32 = scmp.eq.s32.totalorder %s13, 0
      %p33 = por %p31, %p32
      %p34 = scmp.ne.s32.totalorder %s23, %s26
      %p35 = scmp.eq.s32.totalorder %s18, 1
      %p36 = por %p34, %p35
      %p37 = scmp.ne.s32.totalorder %s26, %s27
      %p38 = scmp.eq.s32.totalorder %s18, 0
      %p39 = por %p37, %p38
      %p40 = scmp.ne.s32.totalorder %s26, %s27
      %p41 = scmp.eq.s32.totalorder %s19, 1
      %p42 = por %p40, %p41
      %p44 = scmp.ne.s32.totalorder %s27, %s43
      %p45 = scmp.eq.s32.totalorder %s19, 0
      %p46 = por %p44, %p45
      %s48 = sadd.s32 %s47, 1
      %p51 = scmp.eq.s32.totalorder %s13, 1
      %p52 = scmp.ne.s32.totalorder %s47, %s49
      %p53 = scmp.eq.s32.totalorder %s13, 0
      %p54 = por %p52, %p53
      %p55 = scmp.ne.s32.totalorder %s47, %s49
      %p56 = scmp.eq.s32.totalorder %s18, 1
      %p57 = por %p55, %p56
      %p58 = scmp.ne.s32.totalorder %s49, %s50
      %p59 = scmp.eq.s32.totalorder %s18, 0
      %p60 = por %p58, %p59
      %p61 = scmp.ne.s32.totalorder %s49, %s50
      %p62 = scmp.eq.s32.totalorder %s19, 1
      %p63 = por %p61, %p62
      %p65 = scmp.ne.s32.totalorder %s50, %s64
      %p66 = scmp.eq.s32.totalorder %s19, 0
      %p67 = por %p65, %p66
      %s69 = sadd.s32 %s68, 1
      %p72 = scmp.eq.s32.totalorder %s13, 1
      %p73 = scmp.ne.s32.totalorder %s68, %s70
      %p74 = scmp.eq.s32.totalorder %s13, 0
      %p75 = por %p73, %p74
      %p76 = scmp.ne.s32.totalorder %s68, %s70
      %p77 = scmp.eq.s32.totalorder %s18, 1
      %p78 = por %p76, %p77
      %p79 = scmp.ne.s32.totalorder %s70, %s71
      %p80 = scmp.eq.s32.totalorder %s18, 0
      %p81 = por %p79, %p80
      %p82 = scmp.ne.s32.totalorder %s70, %s71
      %p83 = scmp.eq.s32.totalorder %s19, 1
      %p84 = por %p82, %p83
      %p86 = scmp.ne.s32.totalorder %s71, %s85
      %p87 = scmp.eq.s32.totalorder %s19, 0
      %p88 = por %p86, %p87
      %s90 = sadd.s32 %s89, 1
      %p93 = scmp.eq.s32.totalorder %s13, 1
      %p94 = scmp.ne.s32.totalorder %s89, %s91
      %p95 = scmp.eq.s32.totalorder %s13, 0
      %p96 = por %p94, %p95
      %p97 = scmp.ne.s32.totalorder %s89, %s91
      %p98 = scmp.eq.s32.totalorder %s18, 1
      %p99 = por %p97, %p98
      %p100 = scmp.ne.s32.totalorder %s91, %s92
      %p101 = scmp.eq.s32.totalorder %s18, 0
      %p102 = por %p100, %p101
      %p103 = scmp.ne.s32.totalorder %s91, %s92
      %p104 = scmp.eq.s32.totalorder %s19, 1
      %p105 = por %p103, %p104
      %p107 = scmp.ne.s32.totalorder %s92, %s106
      %p108 = scmp.eq.s32.totalorder %s19, 0
      %p109 = por %p107, %p108
      %s111 = sadd.s32 %s110, 1
      %p114 = scmp.eq.s32.totalorder %s13, 1
      %p115 = scmp.ne.s32.totalorder %s110, %s112
      %p116 = scmp.eq.s32.totalorder %s13, 0
      %p117 = por %p115, %p116
      %p118 = scmp.ne.s32.totalorder %s110, %s112
      %p119 = scmp.eq.s32.totalorder %s18, 1
      %p120 = por %p118, %p119
      %p121 = scmp.ne.s32.totalorder %s112, %s113
      %p122 = scmp.eq.s32.totalorder %s18, 0
      %p123 = por %p121, %p122
      %p124 = scmp.ne.s32.totalorder %s112, %s113
      %p125 = scmp.eq.s32.totalorder %s19, 1
      %p126 = por %p124, %p125
      %p128 = scmp.ne.s32.totalorder %s113, %s127
      %p129 = scmp.eq.s32.totalorder %s19, 0
      %p130 = por %p128, %p129
      %s131 = ssub.s32 %s13, %s20
      %p132 = scmp.eq.s32.totalorder %s131, 0
      %s134 = sadd.s32 %s133, 1
      %s135 = scalar_select %p132, %s133, %s134
      %p138 = pneg %p132
      %p139 = scmp.eq.s32.totalorder %s13, 1
      %p140 = por %p138, %p139
      %p141 = scmp.ne.s32.totalorder %s133, %s136
      %p142 = scmp.eq.s32.totalorder %s13, 0
      %p143 = por %p141, %p142
      %p144 = scmp.ne.s32.totalorder %s133, %s136
      %p145 = scmp.eq.s32.totalorder %s18, 1
      %p146 = por %p144, %p145
      %p147 = scmp.ne.s32.totalorder %s136, %s137
      %p148 = scmp.eq.s32.totalorder %s18, 0
      %p149 = por %p147, %p148
      %p150 = scmp.ne.s32.totalorder %s136, %s137
      %p151 = scmp.eq.s32.totalorder %s19, 1
      %p152 = por %p150, %p151
      %p154 = scmp.ne.s32.totalorder %s137, %s153
      %p155 = scmp.eq.s32.totalorder %s19, 0
      %p156 = por %p154, %p155
      %p157 = scmp.le.s32.totalorder 1, %s13
      %p158 = scmp.lt.s32.totalorder %s13, 3
      %p159 = pnand %p157, %p158
      %p160 = pneg %p159
      // Predicated region
      $region9: #{first_nn_forward.1} parent=5 // pred_check
        _
      $region10: #{first_nn_forward.1} parent=5 // pred_check_branch
        %162 = sbr.rel (%p159) target = $region12
      $region11: #{first_nn_forward.1} parent=5 // pred_region
        %s163 = ssub.s32 %s13, 1
        // Predicated region
        $region13: #{first_nn_forward.1} parent=11 // pred_check
          %p164 = pneg %p60
        $region14: #{first_nn_forward.1} parent=11 // pred_check_branch
          %166 = sbr.rel (%p164) target = $region16
        $region15: #{first_nn_forward.1} parent=11 // pred_region
          %s168 = ssub.s32 12288, 12288
          %169 = vsyncadd [#allocation3], %s168
          %s170 = sshll.u32 [#allocation2], 4
          %s171 = int_to_ptr.vmem [resolvable:$true] %s170
          %176 = dma.hbm_to_vmem [thread:$0]  %s1, 12288, %s171, [#allocation3], 256, 256, 16
        $region16: #{first_nn_forward.1} parent=11 // pred_fallthru
          _
        // Predicated region
        $region17: #{first_nn_forward.1} parent=11 // pred_check
          %p177 = pneg %p81
        $region18: #{first_nn_forward.1} parent=11 // pred_check_branch
          %179 = sbr.rel (%p177) target = $region20
        $region19: #{first_nn_forward.1} parent=11 // pred_region
          _
        $region20: #{first_nn_forward.1} parent=11 // pred_fallthru
          _
        // Predicated region
        $region21: #{first_nn_forward.1} parent=11 // pred_check
          %p180 = pneg %p102
        $region22: #{first_nn_forward.1} parent=11 // pred_check_branch
          %182 = sbr.rel (%p180) target = $region24
        $region23: #{first_nn_forward.1} parent=11 // pred_region
          %s184 = ssub.s32 12288, 12288
          %185 = vsyncadd [#allocation5], %s184
          %s186 = sshll.u32 [#allocation4], 4
          %s187 = int_to_ptr.vmem [resolvable:$true] %s186
          %192 = dma.hbm_to_vmem [thread:$0]  %s3, 12288, %s187, [#allocation5], 128, 128, 8
        $region24: #{first_nn_forward.1} parent=11 // pred_fallthru
          _
        // Predicated region
        $region25: #{first_nn_forward.1} parent=11 // pred_check
          %p193 = pneg %p123
        $region26: #{first_nn_forward.1} parent=11 // pred_check_branch
          %195 = sbr.rel (%p193) target = $region28
        $region27: #{first_nn_forward.1} parent=11 // pred_region
          _
        $region28: #{first_nn_forward.1} parent=11 // pred_fallthru
          _
      $region12: #{first_nn_forward.1} parent=5 // pred_fallthru
        _
      %p196 = scmp.lt.s32.totalorder %s13, 2
      // Predicated region
      $region29: #{first_nn_forward.1} parent=5 // pred_check
        %p197 = pneg %p196
      $region30: #{first_nn_forward.1} parent=5 // pred_check_branch
        %199 = sbr.rel (%p197) target = $region32
      $region31: #{first_nn_forward.1} parent=5 // pred_region
        // Predicated region
        $region33: #{first_nn_forward.1} parent=31 // pred_check
          %p200 = pneg %p33
        $region34: #{first_nn_forward.1} parent=31 // pred_check_branch
          %202 = sbr.rel (%p200) target = $region36
        $region35: #{first_nn_forward.1} parent=31 // pred_region
          %p203 = scmp.lt.s32.totalorder %s13, 1
          %s204 = scalar_select %p203, %s13, 1
          %s205 = smul.addr %s204, 2
          %s206 = smul.addr %s205, 8
          %s207 = scalar_lea.vmem %s0, %s206
        $region36: #{first_nn_forward.1} parent=31 // pred_fallthru
          _
      $region32: #{first_nn_forward.1} parent=5 // pred_fallthru
        _
      %p208 = scmp.le.s32.totalorder 1, %s13
      %p209 = scmp.lt.s32.totalorder %s13, 3
      %p210 = pnand %p208, %p209
      %p211 = pneg %p210
      // Predicated region
      $region37: #{first_nn_forward.1} parent=5 // pred_check
        _
      $region38: #{first_nn_forward.1} parent=5 // pred_check_branch
        %213 = sbr.rel (%p210) target = $region40
      $region39: #{first_nn_forward.1} parent=5 // pred_region
        %s214 = ssub.s32 %s13, 1
        // Predicated region
        $region41: #{first_nn_forward.1} parent=39 // pred_check
          %p215 = pneg %p60
        $region42: #{first_nn_forward.1} parent=39 // pred_check_branch
          %217 = sbr.rel (%p215) target = $region44
        $region43: #{first_nn_forward.1} parent=39 // pred_region
          %218 = dma.done [#allocation3], 12288
        $region44: #{first_nn_forward.1} parent=39 // pred_fallthru
          _
        // Predicated region
        $region45: #{first_nn_forward.1} parent=39 // pred_check
          %p219 = pneg %p102
        $region46: #{first_nn_forward.1} parent=39 // pred_check_branch
          %221 = sbr.rel (%p219) target = $region48
        $region47: #{first_nn_forward.1} parent=39 // pred_region
          %222 = dma.done [#allocation5], 12288
        $region48: #{first_nn_forward.1} parent=39 // pred_fallthru
          _
        %p223 = scmp.lt.s32.totalorder %s18, 1
        %s224 = scalar_select %p223, %s18, 1
        %s225 = smul.addr %s224, 2
        %s226 = smul.addr %s225, 8
        %s227 = scalar_lea.vmem %s0, %s226
        %p228 = pneg %p39
        %p229 = pneg %p36
        %p230 = pneg %p60
        %p231 = pneg %p57
        %p232 = pneg %p81
        %p233 = pneg %p78
        %p234 = pneg %p102
        %p235 = pneg %p99
        %p236 = pneg %p123
        %p237 = pneg %p120
        %p238 = pneg %p149
        %p239 = pneg %p146
        %p240 = scmp.lt.s32.totalorder %s18, 1
        %s241 = scalar_select %p240, %s18, 1
        %s242 = smul.addr %s241, 2
        %s243 = smul.addr %s242, 8
        %s244 = scalar_lea.vmem %s5, %s243
        %p245 = scmp.lt.s32.totalorder %s18, 1
        %s246 = scalar_select %p245, %s18, 1
        %s247 = smul.addr %s246, 2
        %s248 = smul.addr %s247, 8
        %s249 = scalar_lea.vmem %s0, %s248
        %p250 = scmp.lt.s32.totalorder %s18, 1
        %s251 = scalar_select %p250, %s18, 1
        %s252 = smul.addr %s251, 2
        %s253 = smul.addr %s252, 8
        %s254 = scalar_lea.vmem %s5, %s253
        %v255 = vld [vmem:[#allocation2] sm:$0xff]
        %v256 = vld [vmem:[#allocation2 + $0x8] sm:$0xff]
        %v257 = vld [vmem:[#allocation2 + $0x10] sm:$0xff]
        %v258 = vld [vmem:[#allocation2 + $0x18] sm:$0xff]
        %v259 = vld [vmem:[#allocation2 + $0x20] sm:$0xff]
        %v260 = vld [vmem:[#allocation2 + $0x28] sm:$0xff]
        %v261 = vld [vmem:[#allocation2 + $0x30] sm:$0xff]
        %v262 = vld [vmem:[#allocation2 + $0x38] sm:$0xff]
        %v263 = vld [vmem:[#allocation2 + $0x40] sm:$0xff]
        %v264 = vld [vmem:[#allocation2 + $0x48] sm:$0xff]
        %v265 = vld [vmem:[#allocation2 + $0x50] sm:$0xff]
        %v266 = vld [vmem:[#allocation2 + $0x58] sm:$0xff]
        %v267 = vld [vmem:[#allocation2 + $0x60] sm:$0xff]
        %v268 = vld [vmem:[#allocation2 + $0x68] sm:$0xff]
        %v269 = vld [vmem:[#allocation2 + $0x70] sm:$0xff]
        %v270 = vld [vmem:[#allocation2 + $0x78] sm:$0xff]
        %v271 = vld [vmem:[#allocation2 + $0x80] sm:$0xff]
        %v272 = vld [vmem:[#allocation2 + $0x88] sm:$0xff]
        %v273 = vld [vmem:[#allocation2 + $0x90] sm:$0xff]
        %v274 = vld [vmem:[#allocation2 + $0x98] sm:$0xff]
        %v275 = vld [vmem:[#allocation2 + $0xa0] sm:$0xff]
        %v276 = vld [vmem:[#allocation2 + $0xa8] sm:$0xff]
        %v277 = vld [vmem:[#allocation2 + $0xb0] sm:$0xff]
        %v278 = vld [vmem:[#allocation2 + $0xb8] sm:$0xff]
        %v279 = vld [vmem:[#allocation2 + $0xc0] sm:$0xff]
        %v280 = vld [vmem:[#allocation2 + $0xc8] sm:$0xff]
        %v281 = vld [vmem:[#allocation2 + $0xd0] sm:$0xff]
        %v282 = vld [vmem:[#allocation2 + $0xd8] sm:$0xff]
        %v283 = vld [vmem:[#allocation2 + $0xe0] sm:$0xff]
        %v284 = vld [vmem:[#allocation2 + $0xe8] sm:$0xff]
        %v285 = vld [vmem:[#allocation2 + $0xf0] sm:$0xff]
        %v286 = vld [vmem:[#allocation2 + $0xf8] sm:$0xff]
        %v287 = vld [vmem:[#allocation2 + $0x100] sm:$0xff]
        %v288 = vld [vmem:[#allocation2 + $0x108] sm:$0xff]
        %v289 = vld [vmem:[#allocation2 + $0x110] sm:$0xff]
        %v290 = vld [vmem:[#allocation2 + $0x118] sm:$0xff]
        %v291 = vld [vmem:[#allocation2 + $0x120] sm:$0xff]
        %v292 = vld [vmem:[#allocation2 + $0x128] sm:$0xff]
        %v293 = vld [vmem:[#allocation2 + $0x130] sm:$0xff]
        %v294 = vld [vmem:[#allocation2 + $0x138] sm:$0xff]
        %v295 = vld [vmem:[#allocation2 + $0x140] sm:$0xff]
        %v296 = vld [vmem:[#allocation2 + $0x148] sm:$0xff]
        %v297 = vld [vmem:[#allocation2 + $0x150] sm:$0xff]
        %v298 = vld [vmem:[#allocation2 + $0x158] sm:$0xff]
        %v299 = vld [vmem:[#allocation2 + $0x160] sm:$0xff]
        %v300 = vld [vmem:[#allocation2 + $0x168] sm:$0xff]
        %v301 = vld [vmem:[#allocation2 + $0x170] sm:$0xff]
        %v302 = vld [vmem:[#allocation2 + $0x178] sm:$0xff]
        %v303 = vld [vmem:[#allocation2 + $0x180] sm:$0xff]
        %v304 = vld [vmem:[#allocation2 + $0x188] sm:$0xff]
        %v305 = vld [vmem:[#allocation2 + $0x190] sm:$0xff]
        %v306 = vld [vmem:[#allocation2 + $0x198] sm:$0xff]
        %v307 = vld [vmem:[#allocation2 + $0x1a0] sm:$0xff]
        %v308 = vld [vmem:[#allocation2 + $0x1a8] sm:$0xff]
        %v309 = vld [vmem:[#allocation2 + $0x1b0] sm:$0xff]
        %v310 = vld [vmem:[#allocation2 + $0x1b8] sm:$0xff]
        %v311 = vld [vmem:[#allocation2 + $0x1c0] sm:$0xff]
        %v312 = vld [vmem:[#allocation2 + $0x1c8] sm:$0xff]
        %v313 = vld [vmem:[#allocation2 + $0x1d0] sm:$0xff]
        %v314 = vld [vmem:[#allocation2 + $0x1d8] sm:$0xff]
        %v315 = vld [vmem:[#allocation2 + $0x1e0] sm:$0xff]
        %v316 = vld [vmem:[#allocation2 + $0x1e8] sm:$0xff]
        %v317 = vld [vmem:[#allocation2 + $0x1f0] sm:$0xff]
        %v318 = vld [vmem:[#allocation2 + $0x1f8] sm:$0xff]
        %v319 = vld [vmem:[#allocation2 + $0x200] sm:$0xff]
        %v320 = vld [vmem:[#allocation2 + $0x208] sm:$0xff]
        %v321 = vld [vmem:[#allocation2 + $0x210] sm:$0xff]
        %v322 = vld [vmem:[#allocation2 + $0x218] sm:$0xff]
        %v323 = vld [vmem:[#allocation2 + $0x220] sm:$0xff]
        %v324 = vld [vmem:[#allocation2 + $0x228] sm:$0xff]
        %v325 = vld [vmem:[#allocation2 + $0x230] sm:$0xff]
        %v326 = vld [vmem:[#allocation2 + $0x238] sm:$0xff]
        %v327 = vld [vmem:[#allocation2 + $0x240] sm:$0xff]
        %v328 = vld [vmem:[#allocation2 + $0x248] sm:$0xff]
        %v329 = vld [vmem:[#allocation2 + $0x250] sm:$0xff]
        %v330 = vld [vmem:[#allocation2 + $0x258] sm:$0xff]
        %v331 = vld [vmem:[#allocation2 + $0x260] sm:$0xff]
        %v332 = vld [vmem:[#allocation2 + $0x268] sm:$0xff]
        %v333 = vld [vmem:[#allocation2 + $0x270] sm:$0xff]
        %v334 = vld [vmem:[#allocation2 + $0x278] sm:$0xff]
        %v335 = vld [vmem:[#allocation2 + $0x280] sm:$0xff]
        %v336 = vld [vmem:[#allocation2 + $0x288] sm:$0xff]
        %v337 = vld [vmem:[#allocation2 + $0x290] sm:$0xff]
        %v338 = vld [vmem:[#allocation2 + $0x298] sm:$0xff]
        %v339 = vld [vmem:[#allocation2 + $0x2a0] sm:$0xff]
        %v340 = vld [vmem:[#allocation2 + $0x2a8] sm:$0xff]
        %v341 = vld [vmem:[#allocation2 + $0x2b0] sm:$0xff]
        %v342 = vld [vmem:[#allocation2 + $0x2b8] sm:$0xff]
        %v343 = vld [vmem:[#allocation2 + $0x2c0] sm:$0xff]
        %v344 = vld [vmem:[#allocation2 + $0x2c8] sm:$0xff]
        %v345 = vld [vmem:[#allocation2 + $0x2d0] sm:$0xff]
        %v346 = vld [vmem:[#allocation2 + $0x2d8] sm:$0xff]
        %v347 = vld [vmem:[#allocation2 + $0x2e0] sm:$0xff]
        %v348 = vld [vmem:[#allocation2 + $0x2e8] sm:$0xff]
        %v349 = vld [vmem:[#allocation2 + $0x2f0] sm:$0xff]
        %v350 = vld [vmem:[#allocation2 + $0x2f8] sm:$0xff]
        %v351 = vld [vmem:[%s2] sm:$0x3]
        %v352 = vld [vmem:[#allocation4] sm:$0xff]
        %v353 = vld [vmem:[#allocation4 + $0x8] sm:$0xff]
        %v354 = vld [vmem:[#allocation4 + $0x10] sm:$0xff]
        %v355 = vld [vmem:[#allocation4 + $0x18] sm:$0xff]
        %v356 = vld [vmem:[#allocation4 + $0x20] sm:$0xff]
        %v357 = vld [vmem:[#allocation4 + $0x28] sm:$0xff]
        %v358 = vld [vmem:[#allocation4 + $0x30] sm:$0xff]
        %v359 = vld [vmem:[#allocation4 + $0x38] sm:$0xff]
        %v360 = vld [vmem:[#allocation4 + $0x40] sm:$0xff]
        %v361 = vld [vmem:[#allocation4 + $0x48] sm:$0xff]
        %v362 = vld [vmem:[#allocation4 + $0x50] sm:$0xff]
        %v363 = vld [vmem:[#allocation4 + $0x58] sm:$0xff]
        %v364 = vld [vmem:[#allocation4 + $0x60] sm:$0xff]
        %v365 = vld [vmem:[#allocation4 + $0x68] sm:$0xff]
        %v366 = vld [vmem:[#allocation4 + $0x70] sm:$0xff]
        %v367 = vld [vmem:[#allocation4 + $0x78] sm:$0xff]
        %v368 = vld [vmem:[#allocation4 + $0x80] sm:$0xff]
        %v369 = vld [vmem:[#allocation4 + $0x88] sm:$0xff]
        %v370 = vld [vmem:[#allocation4 + $0x90] sm:$0xff]
        %v371 = vld [vmem:[#allocation4 + $0x98] sm:$0xff]
        %v372 = vld [vmem:[#allocation4 + $0xa0] sm:$0xff]
        %v373 = vld [vmem:[#allocation4 + $0xa8] sm:$0xff]
        %v374 = vld [vmem:[#allocation4 + $0xb0] sm:$0xff]
        %v375 = vld [vmem:[#allocation4 + $0xb8] sm:$0xff]
        %v376 = vld [vmem:[#allocation4 + $0xc0] sm:$0xff]
        %v377 = vld [vmem:[#allocation4 + $0xc8] sm:$0xff]
        %v378 = vld [vmem:[#allocation4 + $0xd0] sm:$0xff]
        %v379 = vld [vmem:[#allocation4 + $0xd8] sm:$0xff]
        %v380 = vld [vmem:[#allocation4 + $0xe0] sm:$0xff]
        %v381 = vld [vmem:[#allocation4 + $0xe8] sm:$0xff]
        %v382 = vld [vmem:[#allocation4 + $0xf0] sm:$0xff]
        %v383 = vld [vmem:[#allocation4 + $0xf8] sm:$0xff]
        %v384 = vld [vmem:[#allocation4 + $0x100] sm:$0xff]
        %v385 = vld [vmem:[#allocation4 + $0x108] sm:$0xff]
        %v386 = vld [vmem:[#allocation4 + $0x110] sm:$0xff]
        %v387 = vld [vmem:[#allocation4 + $0x118] sm:$0xff]
        %v388 = vld [vmem:[#allocation4 + $0x120] sm:$0xff]
        %v389 = vld [vmem:[#allocation4 + $0x128] sm:$0xff]
        %v390 = vld [vmem:[#allocation4 + $0x130] sm:$0xff]
        %v391 = vld [vmem:[#allocation4 + $0x138] sm:$0xff]
        %v392 = vld [vmem:[#allocation4 + $0x140] sm:$0xff]
        %v393 = vld [vmem:[#allocation4 + $0x148] sm:$0xff]
        %v394 = vld [vmem:[#allocation4 + $0x150] sm:$0xff]
        %v395 = vld [vmem:[#allocation4 + $0x158] sm:$0xff]
        %v396 = vld [vmem:[#allocation4 + $0x160] sm:$0xff]
        %v397 = vld [vmem:[#allocation4 + $0x168] sm:$0xff]
        %v398 = vld [vmem:[#allocation4 + $0x170] sm:$0xff]
        %v399 = vld [vmem:[#allocation4 + $0x178] sm:$0xff]
        %v400 = vld [vmem:[#allocation4 + $0x180] sm:$0xff]
        %v401 = vld [vmem:[#allocation4 + $0x188] sm:$0xff]
        %v402 = vld [vmem:[#allocation4 + $0x190] sm:$0xff]
        %v403 = vld [vmem:[#allocation4 + $0x198] sm:$0xff]
        %v404 = vld [vmem:[#allocation4 + $0x1a0] sm:$0xff]
        %v405 = vld [vmem:[#allocation4 + $0x1a8] sm:$0xff]
        %v406 = vld [vmem:[#allocation4 + $0x1b0] sm:$0xff]
        %v407 = vld [vmem:[#allocation4 + $0x1b8] sm:$0xff]
        %v408 = vld [vmem:[#allocation4 + $0x1c0] sm:$0xff]
        %v409 = vld [vmem:[#allocation4 + $0x1c8] sm:$0xff]
        %v410 = vld [vmem:[#allocation4 + $0x1d0] sm:$0xff]
        %v411 = vld [vmem:[#allocation4 + $0x1d8] sm:$0xff]
        %v412 = vld [vmem:[#allocation4 + $0x1e0] sm:$0xff]
        %v413 = vld [vmem:[#allocation4 + $0x1e8] sm:$0xff]
        %v414 = vld [vmem:[#allocation4 + $0x1f0] sm:$0xff]
        %v415 = vld [vmem:[#allocation4 + $0x1f8] sm:$0xff]
        %v416 = vld [vmem:[#allocation4 + $0x200] sm:$0xff]
        %v417 = vld [vmem:[#allocation4 + $0x208] sm:$0xff]
        %v418 = vld [vmem:[#allocation4 + $0x210] sm:$0xff]
        %v419 = vld [vmem:[#allocation4 + $0x218] sm:$0xff]
        %v420 = vld [vmem:[#allocation4 + $0x220] sm:$0xff]
        %v421 = vld [vmem:[#allocation4 + $0x228] sm:$0xff]
        %v422 = vld [vmem:[#allocation4 + $0x230] sm:$0xff]
        %v423 = vld [vmem:[#allocation4 + $0x238] sm:$0xff]
        %v424 = vld [vmem:[#allocation4 + $0x240] sm:$0xff]
        %v425 = vld [vmem:[#allocation4 + $0x248] sm:$0xff]
        %v426 = vld [vmem:[#allocation4 + $0x250] sm:$0xff]
        %v427 = vld [vmem:[#allocation4 + $0x258] sm:$0xff]
        %v428 = vld [vmem:[#allocation4 + $0x260] sm:$0xff]
        %v429 = vld [vmem:[#allocation4 + $0x268] sm:$0xff]
        %v430 = vld [vmem:[#allocation4 + $0x270] sm:$0xff]
        %v431 = vld [vmem:[#allocation4 + $0x278] sm:$0xff]
        %v432 = vld [vmem:[#allocation4 + $0x280] sm:$0xff]
        %v433 = vld [vmem:[#allocation4 + $0x288] sm:$0xff]
        %v434 = vld [vmem:[#allocation4 + $0x290] sm:$0xff]
        %v435 = vld [vmem:[#allocation4 + $0x298] sm:$0xff]
        %v436 = vld [vmem:[#allocation4 + $0x2a0] sm:$0xff]
        %v437 = vld [vmem:[#allocation4 + $0x2a8] sm:$0xff]
        %v438 = vld [vmem:[#allocation4 + $0x2b0] sm:$0xff]
        %v439 = vld [vmem:[#allocation4 + $0x2b8] sm:$0xff]
        %v440 = vld [vmem:[#allocation4 + $0x2c0] sm:$0xff]
        %v441 = vld [vmem:[#allocation4 + $0x2c8] sm:$0xff]
        %v442 = vld [vmem:[#allocation4 + $0x2d0] sm:$0xff]
        %v443 = vld [vmem:[#allocation4 + $0x2d8] sm:$0xff]
        %v444 = vld [vmem:[#allocation4 + $0x2e0] sm:$0xff]
        %v445 = vld [vmem:[#allocation4 + $0x2e8] sm:$0xff]
        %v446 = vld [vmem:[#allocation4 + $0x2f0] sm:$0xff]
        %v447 = vld [vmem:[#allocation4 + $0x2f8] sm:$0xff]
        %v448 = vld [vmem:[%s4] sm:$0x1]
        %v449 = vld [vmem:[%s249] sm:$0xff]
        %v450 = vld [vmem:[%s249 + $0x8] sm:$0x3f]
        %v451 = vld [vmem:[%s249 + $0x1] sm:$0xff]
        %v452 = vld [vmem:[%s249 + $0x9] sm:$0x3f]
        %v453 = vld [vmem:[%s249 + $0x2] sm:$0xff]
        %v454 = vld [vmem:[%s249 + $0xa] sm:$0x3f]
        %v456 = vlaneseq
        %v457 = vshrl.u32 %v456, 7
        %v458 = vsub.s32 0, %v457
        %v459 = vrot.slane %v351, %v458
        %v460 = vlaneseq
        %v461 = vshrl.u32 %v460, 7
        %v462 = vsub.s32 1, %v461
        %v463 = vrot.slane %v351, %v462
        %466 = vmatprep.subr.mxu0 %v256
        %467 = vmatpush1.msra.mxu0 %v255
        %468 = vmatprep.subr.mxu0 %v258
        %469 = vmatpush1.msra.mxu0 %v257
        %470 = vmatprep.subr.mxu0 %v260
        %471 = vmatpush1.msra.mxu0 %v259
        %472 = vmatprep.subr.mxu0 %v262
        %473 = vmatpush1.msra.mxu0 %v261
        %474 = vmatprep.subr.mxu0 %v264
        %475 = vmatpush1.msra.mxu0 %v263
        %476 = vmatprep.subr.mxu0 %v266
        %477 = vmatpush1.msra.mxu0 %v265
        %478 = vmatprep.subr.mxu0 %v268
        %479 = vmatpush1.msra.mxu0 %v267
        %480 = vmatprep.subr.mxu0 %v270
        %481 = vmatpush1.msra.mxu0 %v269
        %482 = vmatprep.subr.mxu0 %v272
        %483 = vmatpush1.msra.mxu0 %v271
        %484 = vmatprep.subr.mxu0 %v274
        %485 = vmatpush1.msra.mxu0 %v273
        %486 = vmatprep.subr.mxu0 %v276
        %487 = vmatpush1.msra.mxu0 %v275
        %488 = vmatprep.subr.mxu0 %v278
        %489 = vmatpush1.msra.mxu0 %v277
        %490 = vmatprep.subr.mxu0 %v280
        %491 = vmatpush1.msra.mxu0 %v279
        %492 = vmatprep.subr.mxu0 %v282
        %493 = vmatpush1.msra.mxu0 %v281
        %494 = vmatprep.subr.mxu0 %v284
        %495 = vmatpush1.msra.mxu0 %v283
        %496 = vmatprep.subr.mxu0 %v286
        %497 = vmatpush1.msra.mxu0 %v285
        %498 = vmatprep.subr.mxu0 %v288
        %499 = vmatpush1.msra.mxu0 %v287
        %500 = vmatprep.subr.mxu0 %v290
        %501 = vmatpush1.msra.mxu0 %v289
        %502 = vmatprep.subr.mxu0 %v292
        %503 = vmatpush1.msra.mxu0 %v291
        %504 = vmatprep.subr.mxu0 %v294
        %505 = vmatpush1.msra.mxu0 %v293
        %506 = vmatprep.subr.mxu0 %v296
        %507 = vmatpush1.msra.mxu0 %v295
        %508 = vmatprep.subr.mxu0 %v298
        %509 = vmatpush1.msra.mxu0 %v297
        %510 = vmatprep.subr.mxu0 %v300
        %511 = vmatpush1.msra.mxu0 %v299
        %512 = vmatprep.subr.mxu0 %v302
        %513 = vmatpush1.msra.mxu0 %v301
        %514 = vmatprep.subr.mxu0 %v304
        %515 = vmatpush1.msra.mxu0 %v303
        %516 = vmatprep.subr.mxu0 %v306
        %517 = vmatpush1.msra.mxu0 %v305
        %518 = vmatprep.subr.mxu0 %v308
        %519 = vmatpush1.msra.mxu0 %v307
        %520 = vmatprep.subr.mxu0 %v310
        %521 = vmatpush1.msra.mxu0 %v309
        %522 = vmatprep.subr.mxu0 %v312
        %523 = vmatpush1.msra.mxu0 %v311
        %524 = vmatprep.subr.mxu0 %v314
        %525 = vmatpush1.msra.mxu0 %v313
        %526 = vmatprep.subr.mxu0 %v316
        %527 = vmatpush1.msra.mxu0 %v315
        %528 = vmatprep.subr.mxu0 %v318
        %529 = vmatpush1.msra.mxu0 %v317
        %530 = vmatprep.mubr.f32.mxu0 %v451
        %531 = vmatmul.mubr.f32.gmra.mrb[0].mxu0 %v449
        %v532 = vpop.f32.mrb[0].mxu0
        %v533 = vadd.f32 %v459, %v532
        %v534 = vpop.f32.mrb[0].mxu0
        %v535 = vadd.f32 %v463, %v534
        %536 = vmatprep.mubr.f32.mxu0 %v452
        %537 = vmatmul.mubr.f32.gmra.mrb[0].mxu0 %v450
        %v538 = vpop.f32.mrb[0].mxu0
        %v539 = vadd.f32 %v459, %v538
        %v540 = vpop.f32.mrb[0].mxu0
        %v541 = vadd.f32 %v463, %v540
        %542 = vdwg.mxu0
        %543 = vmatprep.subr.mxu0 %v320
        %544 = vmatpush1.msra.mxu0 %v319
        %545 = vmatprep.subr.mxu0 %v322
        %546 = vmatpush1.msra.mxu0 %v321
        %547 = vmatprep.subr.mxu0 %v324
        %548 = vmatpush1.msra.mxu0 %v323
        %549 = vmatprep.subr.mxu0 %v326
        %550 = vmatpush1.msra.mxu0 %v325
        %551 = vmatprep.subr.mxu0 %v328
        %552 = vmatpush1.msra.mxu0 %v327
        %553 = vmatprep.subr.mxu0 %v330
        %554 = vmatpush1.msra.mxu0 %v329
        %555 = vmatprep.subr.mxu0 %v332
        %556 = vmatpush1.msra.mxu0 %v331
        %557 = vmatprep.subr.mxu0 %v334
        %558 = vmatpush1.msra.mxu0 %v333
        %559 = vmatprep.subr.mxu0 %v336
        %560 = vmatpush1.msra.mxu0 %v335
        %561 = vmatprep.subr.mxu0 %v338
        %562 = vmatpush1.msra.mxu0 %v337
        %563 = vmatprep.subr.mxu0 %v340
        %564 = vmatpush1.msra.mxu0 %v339
        %565 = vmatprep.subr.mxu0 %v342
        %566 = vmatpush1.msra.mxu0 %v341
        %567 = vmatprep.subr.mxu0 %v344
        %568 = vmatpush1.msra.mxu0 %v343
        %569 = vmatprep.subr.mxu0 %v346
        %570 = vmatpush1.msra.mxu0 %v345
        %571 = vmatprep.subr.mxu0 %v348
        %572 = vmatpush1.msra.mxu0 %v347
        %573 = vmatprep.subr.mxu0 %v350
        %574 = vmatpush1.msra.mxu0 %v349
        %575 = vmatprep.subr.mxu0 0.0
        %576 = vmatpush1.msra.mxu0 0.0
        %577 = vmatprep.subr.mxu0 0.0
        %578 = vmatpush1.msra.mxu0 0.0
        %579 = vmatprep.subr.mxu0 0.0
        %580 = vmatpush1.msra.mxu0 0.0
        %581 = vmatprep.subr.mxu0 0.0
        %582 = vmatpush1.msra.mxu0 0.0
        %583 = vmatprep.subr.mxu0 0.0
        %584 = vmatpush1.msra.mxu0 0.0
        %585 = vmatprep.subr.mxu0 0.0
        %586 = vmatpush1.msra.mxu0 0.0
        %587 = vmatprep.subr.mxu0 0.0
        %588 = vmatpush1.msra.mxu0 0.0
        %589 = vmatprep.subr.mxu0 0.0
        %590 = vmatpush1.msra.mxu0 0.0
        %591 = vmatprep.subr.mxu0 0.0
        %592 = vmatpush1.msra.mxu0 0.0
        %593 = vmatprep.subr.mxu0 0.0
        %594 = vmatpush1.msra.mxu0 0.0
        %595 = vmatprep.subr.mxu0 0.0
        %596 = vmatpush1.msra.mxu0 0.0
        %597 = vmatprep.subr.mxu0 0.0
        %598 = vmatpush1.msra.mxu0 0.0
        %599 = vmatprep.subr.mxu0 0.0
        %600 = vmatpush1.msra.mxu0 0.0
        %601 = vmatprep.subr.mxu0 0.0
        %602 = vmatpush1.msra.mxu0 0.0
        %603 = vmatprep.subr.mxu0 0.0
        %604 = vmatpush1.msra.mxu0 0.0
        %605 = vmatprep.subr.mxu0 0.0
        %606 = vmatpush1.msra.mxu0 0.0
        %607 = vmatprep.mubr.f32.mxu0 0.0
        %608 = vmatmul.mubr.f32.gmra.mrb[0].mxu0 %v453
        %v609 = vpop.f32.mrb[0].mxu0
        %v610 = vadd.f32 %v533, %v609
        %v611 = vpop.f32.mrb[0].mxu0
        %v612 = vadd.f32 %v535, %v611
        %613 = vmatprep.mubr.f32.mxu0 0.0
        %614 = vmatmul.mubr.f32.gmra.mrb[0].mxu0 %v454
        %v615 = vpop.f32.mrb[0].mxu0
        %v616 = vadd.f32 %v539, %v615
        %v617 = vpop.f32.mrb[0].mxu0
        %v618 = vadd.f32 %v541, %v617
        %619 = vdwg.mxu0
        %vm624 = vcmask 1046528
        %v625 = vrot.slane %v610, 1
        %v626 = vrot.slane %v616, 1
        %v627 = vsel %vm624, %v625, %v626
        %v628 = vrot.slane %v612, 1
        %v629 = vrot.slane %v618, 1
        %v630 = vsel %vm624, %v628, %v629
        %vm635 = vcmask 1045504
        %v636 = vrot.slane %v610, 2
        %v637 = vrot.slane %v616, 2
        %v638 = vsel %vm635, %v636, %v637
        %v639 = vrot.slane %v612, 2
        %v640 = vrot.slane %v618, 2
        %v641 = vsel %vm635, %v639, %v640
        %v647 = vlaneseq
        %v648 = vshrl.u32 %v647, 7
        %v649 = vsub.s32 0, %v648
        %v650 = vrot.slane %v448, %v649
        %652 = vmatprep.subr.mxu0 0.0
        %653 = vmatpush1.msra.mxu0 %v352
        %654 = vmatprep.subr.mxu0 0.0
        %655 = vmatpush1.msra.mxu0 %v353
        %656 = vmatprep.subr.mxu0 0.0
        %657 = vmatpush1.msra.mxu0 %v354
        %658 = vmatprep.subr.mxu0 0.0
        %659 = vmatpush1.msra.mxu0 %v355
        %660 = vmatprep.subr.mxu0 0.0
        %661 = vmatpush1.msra.mxu0 %v356
        %662 = vmatprep.subr.mxu0 0.0
        %663 = vmatpush1.msra.mxu0 %v357
        %664 = vmatprep.subr.mxu0 0.0
        %665 = vmatpush1.msra.mxu0 %v358
        %666 = vmatprep.subr.mxu0 0.0
        %667 = vmatpush1.msra.mxu0 %v359
        %668 = vmatprep.subr.mxu0 0.0
        %669 = vmatpush1.msra.mxu0 %v360
        %670 = vmatprep.subr.mxu0 0.0
        %671 = vmatpush1.msra.mxu0 %v361
        %672 = vmatprep.subr.mxu0 0.0
        %673 = vmatpush1.msra.mxu0 %v362
        %674 = vmatprep.subr.mxu0 0.0
        %675 = vmatpush1.msra.mxu0 %v363
        %676 = vmatprep.subr.mxu0 0.0
        %677 = vmatpush1.msra.mxu0 %v364
        %678 = vmatprep.subr.mxu0 0.0
        %679 = vmatpush1.msra.mxu0 %v365
        %680 = vmatprep.subr.mxu0 0.0
        %681 = vmatpush1.msra.mxu0 %v366
        %682 = vmatprep.subr.mxu0 0.0
        %683 = vmatpush1.msra.mxu0 %v367
        %684 = vmatprep.subr.mxu0 0.0
        %685 = vmatpush1.msra.mxu0 %v368
        %686 = vmatprep.subr.mxu0 0.0
        %687 = vmatpush1.msra.mxu0 %v369
        %688 = vmatprep.subr.mxu0 0.0
        %689 = vmatpush1.msra.mxu0 %v370
        %690 = vmatprep.subr.mxu0 0.0
        %691 = vmatpush1.msra.mxu0 %v371
        %692 = vmatprep.subr.mxu0 0.0
        %693 = vmatpush1.msra.mxu0 %v372
        %694 = vmatprep.subr.mxu0 0.0
        %695 = vmatpush1.msra.mxu0 %v373
        %696 = vmatprep.subr.mxu0 0.0
        %697 = vmatpush1.msra.mxu0 %v374
        %698 = vmatprep.subr.mxu0 0.0
        %699 = vmatpush1.msra.mxu0 %v375
        %700 = vmatprep.subr.mxu0 0.0
        %701 = vmatpush1.msra.mxu0 %v376
        %702 = vmatprep.subr.mxu0 0.0
        %703 = vmatpush1.msra.mxu0 %v377
        %704 = vmatprep.subr.mxu0 0.0
        %705 = vmatpush1.msra.mxu0 %v378
        %706 = vmatprep.subr.mxu0 0.0
        %707 = vmatpush1.msra.mxu0 %v379
        %708 = vmatprep.subr.mxu0 0.0
        %709 = vmatpush1.msra.mxu0 %v380
        %710 = vmatprep.subr.mxu0 0.0
        %711 = vmatpush1.msra.mxu0 %v381
        %712 = vmatprep.subr.mxu0 0.0
        %713 = vmatpush1.msra.mxu0 %v382
        %714 = vmatprep.subr.mxu0 0.0
        %715 = vmatpush1.msra.mxu0 %v383
        %716 = vmatprep.mubr.f32.mxu0 %v612
        %717 = vmatmul.mubr.f32.gmra.mrb[0].mxu0 %v610
        %v718 = vpop.f32.mrb[0].mxu0
        %v719 = vadd.f32 %v650, %v718
        %v720 = vpop.f32.mrb[0].mxu0
        %721 = vmatprep.mubr.f32.mxu0 %v618
        %722 = vmatmul.mubr.f32.gmra.mrb[0].mxu0 %v616
        %v723 = vpop.f32.mrb[0].mxu0
        %v724 = vadd.f32 %v650, %v723
        %v725 = vpop.f32.mrb[0].mxu0
        %726 = vdwg.mxu0
        %727 = vmatprep.subr.mxu0 0.0
        %728 = vmatpush1.msra.mxu0 %v384
        %729 = vmatprep.subr.mxu0 0.0
        %730 = vmatpush1.msra.mxu0 %v385
        %731 = vmatprep.subr.mxu0 0.0
        %732 = vmatpush1.msra.mxu0 %v386
        %733 = vmatprep.subr.mxu0 0.0
        %734 = vmatpush1.msra.mxu0 %v387
        %735 = vmatprep.subr.mxu0 0.0
        %736 = vmatpush1.msra.mxu0 %v388
        %737 = vmatprep.subr.mxu0 0.0
        %738 = vmatpush1.msra.mxu0 %v389
        %739 = vmatprep.subr.mxu0 0.0
        %740 = vmatpush1.msra.mxu0 %v390
        %741 = vmatprep.subr.mxu0 0.0
        %742 = vmatpush1.msra.mxu0 %v391
        %743 = vmatprep.subr.mxu0 0.0
        %744 = vmatpush1.msra.mxu0 %v392
        %745 = vmatprep.subr.mxu0 0.0
        %746 = vmatpush1.msra.mxu0 %v393
        %747 = vmatprep.subr.mxu0 0.0
        %748 = vmatpush1.msra.mxu0 %v394
        %749 = vmatprep.subr.mxu0 0.0
        %750 = vmatpush1.msra.mxu0 %v395
        %751 = vmatprep.subr.mxu0 0.0
        %752 = vmatpush1.msra.mxu0 %v396
        %753 = vmatprep.subr.mxu0 0.0
        %754 = vmatpush1.msra.mxu0 %v397
        %755 = vmatprep.subr.mxu0 0.0
        %756 = vmatpush1.msra.mxu0 %v398
        %757 = vmatprep.subr.mxu0 0.0
        %758 = vmatpush1.msra.mxu0 %v399
        %759 = vmatprep.subr.mxu0 0.0
        %760 = vmatpush1.msra.mxu0 %v400
        %761 = vmatprep.subr.mxu0 0.0
        %762 = vmatpush1.msra.mxu0 %v401
        %763 = vmatprep.subr.mxu0 0.0
        %764 = vmatpush1.msra.mxu0 %v402
        %765 = vmatprep.subr.mxu0 0.0
        %766 = vmatpush1.msra.mxu0 %v403
        %767 = vmatprep.subr.mxu0 0.0
        %768 = vmatpush1.msra.mxu0 %v404
        %769 = vmatprep.subr.mxu0 0.0
        %770 = vmatpush1.msra.mxu0 %v405
        %771 = vmatprep.subr.mxu0 0.0
        %772 = vmatpush1.msra.mxu0 %v406
        %773 = vmatprep.subr.mxu0 0.0
        %774 = vmatpush1.msra.mxu0 %v407
        %775 = vmatprep.subr.mxu0 0.0
        %776 = vmatpush1.msra.mxu0 %v408
        %777 = vmatprep.subr.mxu0 0.0
        %778 = vmatpush1.msra.mxu0 %v409
        %779 = vmatprep.subr.mxu0 0.0
        %780 = vmatpush1.msra.mxu0 %v410
        %781 = vmatprep.subr.mxu0 0.0
        %782 = vmatpush1.msra.mxu0 %v411
        %783 = vmatprep.subr.mxu0 0.0
        %784 = vmatpush1.msra.mxu0 %v412
        %785 = vmatprep.subr.mxu0 0.0
        %786 = vmatpush1.msra.mxu0 %v413
        %787 = vmatprep.subr.mxu0 0.0
        %788 = vmatpush1.msra.mxu0 %v414
        %789 = vmatprep.subr.mxu0 0.0
        %790 = vmatpush1.msra.mxu0 %v415
        %791 = vmatprep.mubr.f32.mxu0 %v630
        %792 = vmatmul.mubr.f32.gmra.mrb[0].mxu0 %v627
        %v793 = vpop.f32.mrb[0].mxu0
        %v794 = vadd.f32 %v719, %v793
        %v795 = vpop.f32.mrb[0].mxu0
        %796 = vmatprep.mubr.f32.mxu0 %v629
        %797 = vmatmul.mubr.f32.gmra.mrb[0].mxu0 %v626
        %v798 = vpop.f32.mrb[0].mxu0
        %v799 = vadd.f32 %v724, %v798
        %v800 = vpop.f32.mrb[0].mxu0
        %801 = vdwg.mxu0
        %802 = vmatprep.subr.mxu0 0.0
        %803 = vmatpush1.msra.mxu0 %v416
        %804 = vmatprep.subr.mxu0 0.0
        %805 = vmatpush1.msra.mxu0 %v417
        %806 = vmatprep.subr.mxu0 0.0
        %807 = vmatpush1.msra.mxu0 %v418
        %808 = vmatprep.subr.mxu0 0.0
        %809 = vmatpush1.msra.mxu0 %v419
        %810 = vmatprep.subr.mxu0 0.0
        %811 = vmatpush1.msra.mxu0 %v420
        %812 = vmatprep.subr.mxu0 0.0
        %813 = vmatpush1.msra.mxu0 %v421
        %814 = vmatprep.subr.mxu0 0.0
        %815 = vmatpush1.msra.mxu0 %v422
        %816 = vmatprep.subr.mxu0 0.0
        %817 = vmatpush1.msra.mxu0 %v423
        %818 = vmatprep.subr.mxu0 0.0
        %819 = vmatpush1.msra.mxu0 %v424
        %820 = vmatprep.subr.mxu0 0.0
        %821 = vmatpush1.msra.mxu0 %v425
        %822 = vmatprep.subr.mxu0 0.0
        %823 = vmatpush1.msra.mxu0 %v426
        %824 = vmatprep.subr.mxu0 0.0
        %825 = vmatpush1.msra.mxu0 %v427
        %826 = vmatprep.subr.mxu0 0.0
        %827 = vmatpush1.msra.mxu0 %v428
        %828 = vmatprep.subr.mxu0 0.0
        %829 = vmatpush1.msra.mxu0 %v429
        %830 = vmatprep.subr.mxu0 0.0
        %831 = vmatpush1.msra.mxu0 %v430
        %832 = vmatprep.subr.mxu0 0.0
        %833 = vmatpush1.msra.mxu0 %v431
        %834 = vmatprep.subr.mxu0 0.0
        %835 = vmatpush1.msra.mxu0 %v432
        %836 = vmatprep.subr.mxu0 0.0
        %837 = vmatpush1.msra.mxu0 %v433
        %838 = vmatprep.subr.mxu0 0.0
        %839 = vmatpush1.msra.mxu0 %v434
        %840 = vmatprep.subr.mxu0 0.0
        %841 = vmatpush1.msra.mxu0 %v435
        %842 = vmatprep.subr.mxu0 0.0
        %843 = vmatpush1.msra.mxu0 %v436
        %844 = vmatprep.subr.mxu0 0.0
        %845 = vmatpush1.msra.mxu0 %v437
        %846 = vmatprep.subr.mxu0 0.0
        %847 = vmatpush1.msra.mxu0 %v438
        %848 = vmatprep.subr.mxu0 0.0
        %849 = vmatpush1.msra.mxu0 %v439
        %850 = vmatprep.subr.mxu0 0.0
        %851 = vmatpush1.msra.mxu0 %v440
        %852 = vmatprep.subr.mxu0 0.0
        %853 = vmatpush1.msra.mxu0 %v441
        %854 = vmatprep.subr.mxu0 0.0
        %855 = vmatpush1.msra.mxu0 %v442
        %856 = vmatprep.subr.mxu0 0.0
        %857 = vmatpush1.msra.mxu0 %v443
        %858 = vmatprep.subr.mxu0 0.0
        %859 = vmatpush1.msra.mxu0 %v444
        %860 = vmatprep.subr.mxu0 0.0
        %861 = vmatpush1.msra.mxu0 %v445
        %862 = vmatprep.subr.mxu0 0.0
        %863 = vmatpush1.msra.mxu0 %v446
        %864 = vmatprep.subr.mxu0 0.0
        %865 = vmatpush1.msra.mxu0 %v447
        %866 = vmatprep.mubr.f32.mxu0 %v641
        %867 = vmatmul.mubr.f32.gmra.mrb[0].mxu0 %v638
        %v868 = vpop.f32.mrb[0].mxu0
        %v869 = vadd.f32 %v794, %v868
        %v870 = vpop.f32.mrb[0].mxu0
        %871 = vmatprep.mubr.f32.mxu0 %v640
        %872 = vmatmul.mubr.f32.gmra.mrb[0].mxu0 %v637
        %v873 = vpop.f32.mrb[0].mxu0
        %v874 = vadd.f32 %v799, %v873
        %v875 = vpop.f32.mrb[0].mxu0
        %876 = vdwg.mxu0
        %877 = vst [vmem:[%s254] sm:$0xff] %v869
        %878 = vst [vmem:[%s254 + $0x8] sm:$0xf] %v874
        %p879 = scmp.lt.s32.totalorder %s18, 1
        %s880 = scalar_select %p879, %s18, 1
        %s881 = smul.addr %s880, 2
        %s882 = smul.addr %s881, 8
        %s883 = scalar_lea.vmem %s5, %s882
        // Predicated region
        $region49: #{first_nn_forward.1} parent=39 // pred_check
          %p884 = pneg %p146
        $region50: #{first_nn_forward.1} parent=39 // pred_check_branch
          %886 = sbr.rel (%p884) target = $region52
        $region51: #{first_nn_forward.1} parent=39 // pred_region
          _
        $region52: #{first_nn_forward.1} parent=39 // pred_fallthru
          _
      $region40: #{first_nn_forward.1} parent=5 // pred_fallthru
        _
      %p887 = scmp.le.s32.totalorder 2, %s13
      // Predicated region
      $region53: #{first_nn_forward.1} parent=5 // pred_check
        %p888 = pneg %p887
      $region54: #{first_nn_forward.1} parent=5 // pred_check_branch
        %890 = sbr.rel (%p888) target = $region56
      $region55: #{first_nn_forward.1} parent=5 // pred_region
        %s891 = ssub.s32 %s13, 2
        // Predicated region
        $region57: #{first_nn_forward.1} parent=55 // pred_check
          %p892 = pneg %p152
        $region58: #{first_nn_forward.1} parent=55 // pred_check_branch
          %894 = sbr.rel (%p892) target = $region60
        $region59: #{first_nn_forward.1} parent=55 // pred_region
          %p895 = scmp.lt.s32.totalorder %s19, 1
          %s896 = scalar_select %p895, %s19, 1
          %s897 = smul.addr %s896, 2
          %s898 = smul.addr %s897, 8
          %s899 = scalar_lea.vmem %s5, %s898
        $region60: #{first_nn_forward.1} parent=55 // pred_fallthru
          _
      $region56: #{first_nn_forward.1} parent=5 // pred_fallthru
        _
    $region6: #{first_nn_forward.1} parent=1 // loop_footer
      %s17 = sadd.s32 1, %s13
    $region7: #{first_nn_forward.1} parent=1 // loop_footer_branch
      %12 = sbr.rel target = $region3
    $region8: #{first_nn_forward.1} parent=1 // loop_exit
      _
    %900 = vsyncpa [#allocation3], 1
    %s901 = scalar_lea.sflag [#allocation3], 1
    %902 = vsyncpa %s901, 1
    %903 = vsyncpa [#allocation5], 1

</llo_original>
